<compile_context>
chip_gen: v7x
topology: tpu7x:2x2x1
jax: 0.10.0
libtpu: 0.0.40
codegen_flags: <defaults>
</compile_context>

<pallas_src>
import jax
import jax.numpy as jnp
from jax.experimental import pallas as pl
from jax.experimental.pallas import tpu as pltpu

# ---------------- problem sizes (small, consistent with the module) ----------------
B = 2                    # batch
C = 4                    # features = task.state_dim[0]
T = 8                    # state_dim[1]  (time)
ACT_DIM = 5              # action_dim
W = ACT_DIM - 1          # actions (spatial width) = 4
TOUT = T - 1 - 2         # stride_time = conv1 output length = 5
H2 = 16                  # conv1 out channels
H1 = 32                  # conv2 out channels

K_IN = C * T * W         # 128: raw-x lane width (crop + taps folded into the weight)
N1 = W * TOUT * H2       # 320: conv1 output lanes, (w, t, o) w-major
N2 = W * H1              # 128: conv2 output lanes, (w, o2) w-major
NA = 2 * W + 1           # 9:   [action1[:-1], action2[:-1], 1.0]  (last lane carries b3)
OUT_LANES = 128          # lane-dense output width (sliced to 1 by the caller)
MAX_TILE_B = 256         # rows per grid step once the batch is large


# ---------------------------------- Pallas kernel ----------------------------------
def _critic_kernel(x_ref, w1_ref, b1_ref, w2_ref, b2_ref, w3p_ref, a_ref,
                   w3a_ref, out_ref):
    # x_ref:   [TB, 128] bf16   raw x, lane index = (c*T + t)*W + w
    # w1_ref:  [128, 320] bf16  Toeplitz-over-time, block-diag-over-w conv1 weight
    # b1_ref:  [1, 320]  f32
    # w2_ref:  [320, 128] bf16  block-diag-over-w conv2 weight
    # b2_ref:  [1, 128]  f32
    # w3p_ref: [1, 128]  f32    layer3 weights for phi2 (col = w*H1 + o2)
    # a_ref:   [TB, 9]   f32    [action1[:, :-1], action2[:, :-1], 1.0]
    # w3a_ref: [1, 9]    f32    [W3_action1, W3_action2, b3]
    # out_ref: [TB, 128] f32    scalar result broadcast across lanes

    # conv1 for every (w, t) position in ONE bf16 MXU matmul (f32 accumulate).
    phi1 = jnp.maximum(
        jnp.dot(x_ref[...], w1_ref[...], preferred_element_type=jnp.float32)
        + b1_ref[...], 0.0)                                     # [TB, 320] f32

    # conv2 for every w position in ONE bf16 MXU matmul.
    phi2 = jnp.maximum(
        jnp.dot(phi1.astype(jnp.bfloat16), w2_ref[...],
                preferred_element_type=jnp.float32)
        + b2_ref[...], 0.0)                                     # [TB, 128] f32

    # layer3: N=1 contraction -> VPU multiply + lane reduce.  b3 is carried by the
    # constant-1 lane of a_ref, so there is no SMEM scalar read in the epilogue.
    score = (jnp.sum(phi2 * w3p_ref[...], axis=1, keepdims=True)
             + jnp.sum(a_ref[...] * w3a_ref[...], axis=1, keepdims=True))
    out_ref[...] = jnp.broadcast_to(score, out_ref.shape)       # lane-dense store


# ------------------------- one-time weight re-layout (host) -------------------------
def prepare_weights(params):
    """One-time re-layout of the PyTorch parameters into kernel operands."""
    W1, b1, W2, b2, W3, b3 = (params[k] for k in ("W1", "b1", "W2", "b2", "W3", "b3"))

    # conv1 as a Toeplitz band over time (folds the x[:, :, 1:, :] crop and the 3 taps):
    #   band[c*T + t_in, t*H2 + o] = W1[o, c, t_in - 1 - t, 0]   for 0 <= t_in-1-t < 3.
    w1m = jnp.transpose(W1[:, :, :, 0], (1, 2, 0))                 # [C, 3, H2]
    band = jnp.zeros((C, T, TOUT, H2), jnp.float32)
    for t in range(TOUT):
        for dt in range(3):
            band = band.at[:, 1 + t + dt, t, :].set(w1m[:, dt, :])
    band = band.reshape(C * T, TOUT * H2)                          # [32, 80]

    eye_w = jnp.eye(W, dtype=jnp.float32)
    # Block-diagonal over the width/action axis ONLY (w stays on lanes end-to-end;
    # this is what lets raw x be DMA'd with a free reshape and keeps the epilogue
    # row-constant).  Row = (c*T + t_in)*W + w_in, col = w_out*TOUT*H2 + t*H2 + o.
    w1_big = (band[:, None, None, :] * eye_w[None, :, :, None]).reshape(K_IN, N1)

    # conv2 as a matmul: w2m[(t*H2 + i), o] = W2[o, i, t, 0]; block-diag over w.
    w2m = jnp.transpose(W2[:, :, :, 0], (2, 1, 0)).reshape(TOUT * H2, H1)
    w2_big = (eye_w[:, None, :, None] * w2m[None, :, None, :]).reshape(N1, N2)

    b1_wide = jnp.tile(b1, W * TOUT)[None, :]                      # [1, 320]
    b2_wide = jnp.tile(b2, W)[None, :]                             # [1, 128]

    # Layer3 weights reordered to the (w-major, channel-minor) phi2 columns, and the
    # action weights with b3 appended on the constant-1 lane.
    w3_phi = W3[0, :H1 * W].reshape(H1, W).T.reshape(1, N2)        # [1, 128]
    w3_act = jnp.concatenate([W3[0, H1 * W:], b3]).reshape(1, NA)  # [1, 9]

    return {
        "w1": w1_big.astype(jnp.bfloat16),
        "b1": b1_wide.astype(jnp.float32),
        "w2": w2_big.astype(jnp.bfloat16),
        "b2": b2_wide.astype(jnp.float32),
        "w3p": w3_phi.astype(jnp.float32),
        "w3a": w3_act.astype(jnp.float32),
    }


def _round_up(n, m):
    return (n + m - 1) // m * m


# ----------------------------------- forward call -----------------------------------
@jax.jit
def critic_hierarchical_pallas(x, action1, action2, prepped):
    """x: [B, C, T, W] (NCHW); action1/action2: [B, ACT_DIM].  Returns [B, 1] f32."""
    Bx = x.shape[0]
    tile_b = min(_round_up(Bx, 8), MAX_TILE_B)
    b_pad = _round_up(Bx, tile_b)
    grid = (b_pad // tile_b,)

    # Raw x goes straight in: [B, C, T, W] -> [B, C*T*W] is a layout-free reshape of a
    # contiguous array; the crop and im2col live inside the conv1 weight.
    x_flat = x.reshape(Bx, K_IN).astype(jnp.bfloat16)
    a_aug = jnp.concatenate(
        [action1[:, :W].astype(jnp.float32),
         action2[:, :W].astype(jnp.float32),
         jnp.ones((Bx, 1), jnp.float32)], axis=1)                  # [B, 9]
    if b_pad != Bx:
        x_flat = jnp.pad(x_flat, ((0, b_pad - Bx), (0, 0)))
        a_aug = jnp.pad(a_aug, ((0, b_pad - Bx), (0, 0)))

    args = (x_flat, prepped["w1"], prepped["b1"], prepped["w2"], prepped["b2"],
            prepped["w3p"], a_aug, prepped["w3a"])

    in_specs = [
        pl.BlockSpec((tile_b, K_IN), lambda i: (i, 0)),   # x rows
        pl.BlockSpec((K_IN, N1), lambda i: (0, 0)),       # conv1 weight (resident)
        pl.BlockSpec((1, N1), lambda i: (0, 0)),
        pl.BlockSpec((N1, N2), lambda i: (0, 0)),         # conv2 weight (resident)
        pl.BlockSpec((1, N2), lambda i: (0, 0)),
        pl.BlockSpec((1, N2), lambda i: (0, 0)),
        pl.BlockSpec((tile_b, NA), lambda i: (i, 0)),     # action rows
        pl.BlockSpec((1, NA), lambda i: (0, 0)),
    ]
    out_specs = pl.BlockSpec((tile_b, OUT_LANES), lambda i: (i, 0))

    # True FLOPs (not the zero-padded block-diagonal count).
    flops = 2 * Bx * (W * TOUT * (C * 3) * H2 + W * TOUT * H2 * H1 + N2 + NA)
    nbytes = (sum(int(a.size) * a.dtype.itemsize for a in args)
              + b_pad * OUT_LANES * 4)
    cost = pl.CostEstimate(flops=flops, transcendentals=0, bytes_accessed=nbytes)

    out = pl.pallas_call(
        _critic_kernel,
        out_shape=jax.ShapeDtypeStruct((b_pad, OUT_LANES), jnp.float32),
        grid=grid,
        in_specs=in_specs,
        out_specs=out_specs,
        compiler_params=pltpu.CompilerParams(
            dimension_semantics=("parallel",),
            allow_input_fusion=[True, False, False, False, False, False, True, False],
        ),
        cost_estimate=cost,
    )(*args)
    return out[:Bx, :1]


# --------------------------- pure-JAX reference (for checking) ----------------------
def _q(a):
    return a.astype(jnp.bfloat16).astype(jnp.float32)


def critic_hierarchical_ref(x, action1, action2, params, quantized=False):
    W1, b1, W2, b2, W3, b3 = (params[k] for k in ("W1", "b1", "W2", "b2", "W3", "b3"))
    Bx = x.shape[0]
    tout = x.shape[2] - 1 - 2
    if quantized:                       # mimic the kernel's bf16 MXU operand rounding
        x, W1, W2 = _q(x), _q(W1), _q(W2)
    a1 = action1[:, None, None, :-1]
    a2 = action2[:, None, None, :-1]
    xc = x[:, :, 1:, :]
    dn = ("NCHW", "OIHW", "NCHW")
    hp = jax.lax.Precision.HIGHEST
    phi1 = jax.nn.relu(jax.lax.conv_general_dilated(
        xc, W1, window_strides=(1, 1), padding="VALID",
        dimension_numbers=dn, precision=hp) + b1[None, :, None, None])
    if quantized:
        phi1 = _q(phi1)
    phi2 = jax.nn.relu(jax.lax.conv_general_dilated(
        phi1, W2, window_strides=(tout, 1), padding="VALID",
        dimension_numbers=dn, precision=hp) + b2[None, :, None, None])
    h = jnp.concatenate([phi2, a1, a2], axis=1)
    return jnp.dot(h.reshape(Bx, -1), W3.T, precision=hp) + b3


# --------------------------------------- main ---------------------------------------
def _init_params(key):
    ks = jax.random.split(key, 6)

    def u(k, shape, fan_in):
        bound = 1.0 / jnp.sqrt(jnp.float32(fan_in))
        return jax.random.uniform(k, shape, jnp.float32, -bound, bound)

    return {
        "W1": u(ks[0], (H2, C, 3, 1), C * 3),
        "b1": u(ks[1], (H2,), C * 3),
        "W2": u(ks[2], (H1, H2, TOUT, 1), H2 * TOUT),
        "b2": u(ks[3], (H1,), H2 * TOUT),
        "W3": u(ks[4], (1, (H1 + 2) * W), (H1 + 2) * W),
        "b3": u(ks[5], (1,), (H1 + 2) * W),
    }


if __name__ == "__main__":
    key = jax.random.PRNGKey(0)
    kx, ka1, ka2, kp = jax.random.split(key, 4)

    x = jax.random.normal(kx, (B, C, T, W), jnp.float32)
    action1 = jax.random.normal(ka1, (B, ACT_DIM), jnp.float32)
    action2 = jax.random.normal(ka2, (B, ACT_DIM), jnp.float32)
    params = _init_params(kp)

    prepped = prepare_weights(params)          # one-time weight re-layout
    out = critic_hierarchical_pallas(x, action1, action2, prepped)
    out = jax.block_until_ready(out)

    ref_q = critic_hierarchical_ref(x, action1, action2, params, quantized=True)
    ref_f = critic_hierarchical_ref(x, action1, action2, params, quantized=False)

    assert out.shape == (B, 1)
    # Tight check against a reference using the same bf16 operand rounding as the MXU.
    assert jnp.allclose(out, ref_q, atol=2e-3, rtol=2e-3), (out, ref_q)
    # Loose sanity check against the exact f32 module semantics (bf16 quantization only).
    assert jnp.allclose(out, ref_f, atol=1e-1, rtol=1e-1), (out, ref_f)

    print("KERNEL_OK")
</pallas_src>

<mosaic_0001>
module attributes {stable_mosaic.version = 11 : i64} {
  func.func @_critic_kernel(%arg0: i32, %arg1: memref<8x128xbf16, #tpu.memory_space<vmem>>, %arg2: memref<128x320xbf16, #tpu.memory_space<vmem>>, %arg3: memref<1x320xf32, #tpu.memory_space<vmem>>, %arg4: memref<320x128xbf16, #tpu.memory_space<vmem>>, %arg5: memref<1x128xf32, #tpu.memory_space<vmem>>, %arg6: memref<1x128xf32, #tpu.memory_space<vmem>>, %arg7: memref<8x9xf32, #tpu.memory_space<vmem>>, %arg8: memref<1x9xf32, #tpu.memory_space<vmem>>, %arg9: memref<8x128xf32, #tpu.memory_space<vmem>>) attributes {dimension_semantics = [#tpu.dimension_semantics<parallel>], iteration_bounds = array<i64: 1>, scalar_prefetch = 0 : i64, scratch_operands = 0 : i64, tpu.core_type = #tpu.core_type<tc>, window_params = [{transform_indices = @transform_0, window_bounds = array<i64: 8, 128>}, {pipeline_mode = #tpu.pipeline_mode<synchronous>, transform_indices = @transform_1, window_bounds = array<i64: 128, 320>}, {pipeline_mode = #tpu.pipeline_mode<synchronous>, transform_indices = @transform_2, window_bounds = array<i64: 1, 320>}, {pipeline_mode = #tpu.pipeline_mode<synchronous>, transform_indices = @transform_3, window_bounds = array<i64: 320, 128>}, {pipeline_mode = #tpu.pipeline_mode<synchronous>, transform_indices = @transform_4, window_bounds = array<i64: 1, 128>}, {pipeline_mode = #tpu.pipeline_mode<synchronous>, transform_indices = @transform_5, window_bounds = array<i64: 1, 128>}, {transform_indices = @transform_6, window_bounds = array<i64: 8, 9>}, {pipeline_mode = #tpu.pipeline_mode<synchronous>, transform_indices = @transform_7, window_bounds = array<i64: 1, 9>}, {transform_indices = @transform_8, window_bounds = array<i64: 8, 128>}]} {
    %c0 = arith.constant 0 : index
    %c0_0 = arith.constant 0 : index
    %0 = vector.load %arg1[%c0, %c0_0] : memref<8x128xbf16, #tpu.memory_space<vmem>>, vector<8x128xbf16>
    %c0_1 = arith.constant 0 : index
    %c0_2 = arith.constant 0 : index
    %1 = vector.load %arg2[%c0_1, %c0_2] : memref<128x320xbf16, #tpu.memory_space<vmem>>, vector<128x320xbf16>
    %cst = arith.constant dense<0.000000e+00> : vector<8x320xf32>
    %2 = tpu.matmul %0, %1, %cst {dimension_numbers = #tpu.dot_dimension_numbers<[1], [0], [0], [1], [0, 0, 1, 1], [], []>} : vector<8x128xbf16>, vector<128x320xbf16>, vector<8x320xf32> -> vector<8x320xf32>
    %c0_3 = arith.constant 0 : index
    %c0_4 = arith.constant 0 : index
    %3 = vector.load %arg3[%c0_3, %c0_4] : memref<1x320xf32, #tpu.memory_space<vmem>>, vector<1x320xf32>
    %4 = vector.broadcast %3 : vector<1x320xf32> to vector<8x320xf32>
    %5 = arith.addf %2, %4 : vector<8x320xf32>
    %cst_5 = arith.constant 0.000000e+00 : f32
    %6 = vector.broadcast %cst_5 : f32 to vector<8x320xf32>
    %7 = arith.maximumf %5, %6 : vector<8x320xf32>
    %8 = arith.truncf %7 : vector<8x320xf32> to vector<8x320xbf16>
    %c0_6 = arith.constant 0 : index
    %c0_7 = arith.constant 0 : index
    %9 = vector.load %arg4[%c0_6, %c0_7] : memref<320x128xbf16, #tpu.memory_space<vmem>>, vector<320x128xbf16>
    %cst_8 = arith.constant dense<0.000000e+00> : vector<8x128xf32>
    %10 = tpu.matmul %8, %9, %cst_8 {dimension_numbers = #tpu.dot_dimension_numbers<[1], [0], [0], [1], [0, 0, 1, 1], [], []>} : vector<8x320xbf16>, vector<320x128xbf16>, vector<8x128xf32> -> vector<8x128xf32>
    %c0_9 = arith.constant 0 : index
    %c0_10 = arith.constant 0 : index
    %11 = vector.load %arg5[%c0_9, %c0_10] : memref<1x128xf32, #tpu.memory_space<vmem>>, vector<1x128xf32>
    %12 = vector.broadcast %11 : vector<1x128xf32> to vector<8x128xf32>
    %13 = arith.addf %10, %12 : vector<8x128xf32>
    %cst_11 = arith.constant 0.000000e+00 : f32
    %14 = vector.broadcast %cst_11 : f32 to vector<8x128xf32>
    %15 = arith.maximumf %13, %14 : vector<8x128xf32>
    %c0_12 = arith.constant 0 : index
    %c0_13 = arith.constant 0 : index
    %16 = vector.load %arg6[%c0_12, %c0_13] : memref<1x128xf32, #tpu.memory_space<vmem>>, vector<1x128xf32>
    %17 = vector.broadcast %16 : vector<1x128xf32> to vector<8x128xf32>
    %18 = arith.mulf %15, %17 : vector<8x128xf32>
    %cst_14 = arith.constant dense<0.000000e+00> : vector<8xf32>
    %19 = vector.multi_reduction <add>, %18, %cst_14 [1] : vector<8x128xf32> to vector<8xf32>
    %20 = vector.shape_cast %19 : vector<8xf32> to vector<8x1xf32>
    %c0_15 = arith.constant 0 : index
    %c0_16 = arith.constant 0 : index
    %21 = vector.load %arg7[%c0_15, %c0_16] : memref<8x9xf32, #tpu.memory_space<vmem>>, vector<8x9xf32>
    %c0_17 = arith.constant 0 : index
    %c0_18 = arith.constant 0 : index
    %22 = vector.load %arg8[%c0_17, %c0_18] : memref<1x9xf32, #tpu.memory_space<vmem>>, vector<1x9xf32>
    %23 = vector.broadcast %22 : vector<1x9xf32> to vector<8x9xf32>
    %24 = arith.mulf %21, %23 : vector<8x9xf32>
    %cst_19 = arith.constant dense<0.000000e+00> : vector<8xf32>
    %25 = vector.multi_reduction <add>, %24, %cst_19 [1] : vector<8x9xf32> to vector<8xf32>
    %26 = vector.shape_cast %25 : vector<8xf32> to vector<8x1xf32>
    %27 = arith.addf %20, %26 : vector<8x1xf32>
    %28 = vector.shape_cast %27 : vector<8x1xf32> to vector<8x1xf32>
    %29 = vector.broadcast %28 : vector<8x1xf32> to vector<8x128xf32>
    %c0_20 = arith.constant 0 : index
    %c0_21 = arith.constant 0 : index
    %30 = vector.load %arg9[%c0_20, %c0_21] : memref<8x128xf32, #tpu.memory_space<vmem>>, vector<8x128xf32>
    tpu.vector_store %arg9[%c0_20, %c0_21], %29 {strides = array<i32>} : memref<8x128xf32, #tpu.memory_space<vmem>>, vector<8x128xf32>,
    return
  }
  func.func @transform_0(%arg0: i32) -> (i32, i32) {
    %c0_i32 = arith.constant 0 : i32
    %c0_i32_0 = arith.constant 0 : i32
    return %arg0, %c0_i32 : i32, i32
  }
  func.func @transform_1(%arg0: i32) -> (i32, i32) {
    %c0_i32 = arith.constant 0 : i32
    %c0_i32_0 = arith.constant 0 : i32
    %c0_i32_1 = arith.constant 0 : i32
    return %c0_i32, %c0_i32_0 : i32, i32
  }
  func.func @transform_2(%arg0: i32) -> (i32, i32) {
    %c0_i32 = arith.constant 0 : i32
    %c0_i32_0 = arith.constant 0 : i32
    %c0_i32_1 = arith.constant 0 : i32
    return %c0_i32, %c0_i32_0 : i32, i32
  }
  func.func @transform_3(%arg0: i32) -> (i32, i32) {
    %c0_i32 = arith.constant 0 : i32
    %c0_i32_0 = arith.constant 0 : i32
    %c0_i32_1 = arith.constant 0 : i32
    return %c0_i32, %c0_i32_0 : i32, i32
  }
  func.func @transform_4(%arg0: i32) -> (i32, i32) {
    %c0_i32 = arith.constant 0 : i32
    %c0_i32_0 = arith.constant 0 : i32
    %c0_i32_1 = arith.constant 0 : i32
    return %c0_i32, %c0_i32_0 : i32, i32
  }
  func.func @transform_5(%arg0: i32) -> (i32, i32) {
    %c0_i32 = arith.constant 0 : i32
    %c0_i32_0 = arith.constant 0 : i32
    %c0_i32_1 = arith.constant 0 : i32
    return %c0_i32, %c0_i32_0 : i32, i32
  }
  func.func @transform_6(%arg0: i32) -> (i32, i32) {
    %c0_i32 = arith.constant 0 : i32
    %c0_i32_0 = arith.constant 0 : i32
    return %arg0, %c0_i32 : i32, i32
  }
  func.func @transform_7(%arg0: i32) -> (i32, i32) {
    %c0_i32 = arith.constant 0 : i32
    %c0_i32_0 = arith.constant 0 : i32
    %c0_i32_1 = arith.constant 0 : i32
    return %c0_i32, %c0_i32_0 : i32, i32
  }
  func.func @transform_8(%arg0: i32) -> (i32, i32) {
    %c0_i32 = arith.constant 0 : i32
    %c0_i32_0 = arith.constant 0 : i32
    return %arg0, %c0_i32 : i32, i32
  }
}

</mosaic_0001>

<llo_original>
// kernel: critic_hierarchical_pallas.2
$region0: #{critic_hierarchical_pallas.2}
  #allocation0 [shape = 'u32[]', space=smem, size = 0x4, offset = 0x4, fixed_abs, tag = 'smem constant byte address 0x4 - core index']
  #allocation1 [shape = 'u32[144,128]{1,0:T(1,128)}', space=vmem, size = 0x12000, scoped, tag = 'internal scratch']
  #allocation2 [shape = 'u32[2048]{0}', space=vmem, size = 0x2000, scoped, tag = 'scoped memory for critic_hierarchical_pallas.2']
  #allocation3 [shape = 'u32[2048]{0}', space=vmem, size = 0x2000, scoped, tag = 'scoped memory for critic_hierarchical_pallas.2']
  #allocation4 [shape = 'u32[2048]{0}', space=vmem, size = 0x2000, scoped, tag = 'scoped memory for critic_hierarchical_pallas.2']
  #allocation5 [shape = 'u32[2048]{0}', space=vmem, size = 0x2000, scoped, tag = 'scoped memory for critic_hierarchical_pallas.2']
  #allocation6 [shape = 'u32[2048]{0}', space=vmem, size = 0x2000, scoped, tag = 'scoped memory for critic_hierarchical_pallas.2']
  #allocation7 [shape = 'u32[2048]{0}', space=vmem, size = 0x2000, scoped, tag = 'scoped memory for critic_hierarchical_pallas.2']
  #allocation8 [shape = 'u32[2048]{0}', space=vmem, size = 0x2000, scoped, tag = 'scoped memory for critic_hierarchical_pallas.2']
  #allocation9 [shape = 'u32[2048]{0}', space=vmem, size = 0x2000, scoped, tag = 'scoped memory for critic_hierarchical_pallas.2']
  #allocation10 [shape = 'u32[2048]{0}', space=vmem, size = 0x2000, scoped, tag = 'scoped memory for critic_hierarchical_pallas.2']
  #allocation11 [shape = 'u32[2048]{0}', space=vmem, size = 0x2000, scoped, tag = 'scoped memory for critic_hierarchical_pallas.2']
  %s0 = inlined_call_operand.vmem [shape: bf16[128,320], index: 0, kind: input, shape index: {}]
  %s1 = inlined_call_operand.vmem [shape: f32[1,320], index: 1, kind: input, shape index: {}]
  %s2 = inlined_call_operand.vmem [shape: bf16[320,128], index: 2, kind: input, shape index: {}]
  %s3 = inlined_call_operand.vmem [shape: f32[1,128], index: 3, kind: input, shape index: {}]
  %s4 = inlined_call_operand.vmem [shape: f32[1,128], index: 4, kind: input, shape index: {}]
  %s5 = inlined_call_operand.vmem [shape: f32[1,9], index: 5, kind: input, shape index: {}]
  %s6 = inlined_call_operand.vmem [shape: f32[2,9], index: 6, kind: input, shape index: {}]
  %s7 = inlined_call_operand.<no memory space> [shape: f32[], index: 7, kind: input, shape index: {}]
  %s8 = inlined_call_operand.vmem [shape: bf16[2,128], index: 8, kind: input, shape index: {}]
  %s9 = inlined_call_operand.<no memory space> [shape: bf16[], index: 9, kind: input, shape index: {}]
  %s10 = inlined_call_operand.vmem [shape: f32[8,128], index: 10, kind: output, shape index: {}]
  %s11 = sld [smem:[#allocation0]]
  $region42: #{critic_hierarchical_pallas.2} parent=0
    _
  %s13 = ssub.s32 1, %s11
  %s14 = scalar_select 0, %s13, %s11
  %v15 = vstv %s9
  %v16 = vunpack.i.l.bf16 %v15
  %v18 = vunpack.i.h.bf16 %v15
  %v20 = vstv %s7
  $region1: #{critic_hierarchical_pallas.2} parent=0
    #allocation12 [shape = 'u8[2048]{0}', space=vmem, size = 0x800, dematerialized = true, scoped, tag = 'FusionAdapter Buffer %fusion.2 = bf16[8,128]{1,0:T(8,128)(2,1)} fusion(%param_8.1, %param_9), kind=kLoop, calls=%fused_computation.2.clone, metadata={op_name="jit(critic_hierarchical_pallas)/jit(_pad)/pad" stack_frame_id=11}']
    #allocation13 [shape = 'u8[4096]{0}', space=vmem, size = 0x1000, dematerialized = true, scoped, tag = 'FusionAdapter Buffer %fusion.1 = f32[8,9]{1,0:T(8,128)} fusion(%param_6.2, %param_7.2), kind=kLoop, calls=%fused_computation.1.clone, metadata={op_name="jit(critic_hierarchical_pallas)/jit(_pad)/pad" stack_frame_id=12}']
    // Predicated region
    $region2: #{critic_hierarchical_pallas.2} parent=1 // pred_check
      _
    $region3: #{critic_hierarchical_pallas.2} parent=1 // pred_check_branch
      %22 = sbr.rel (0) target = $region5
    $region4: #{critic_hierarchical_pallas.2} parent=1 // pred_region
      _
    $region5: #{critic_hierarchical_pallas.2} parent=1 // pred_fallthru
      _
    // Predicated region
    $region6: #{critic_hierarchical_pallas.2} parent=1 // pred_check
      _
    $region7: #{critic_hierarchical_pallas.2} parent=1 // pred_check_branch
      %24 = sbr.rel (0) target = $region9
    $region8: #{critic_hierarchical_pallas.2} parent=1 // pred_region
      _
    $region9: #{critic_hierarchical_pallas.2} parent=1 // pred_fallthru
      _
    // Predicated region
    $region10: #{critic_hierarchical_pallas.2} parent=1 // pred_check
      _
    $region11: #{critic_hierarchical_pallas.2} parent=1 // pred_check_branch
      %26 = sbr.rel (0) target = $region13
    $region12: #{critic_hierarchical_pallas.2} parent=1 // pred_region
      _
    $region13: #{critic_hierarchical_pallas.2} parent=1 // pred_fallthru
      _
    // Predicated region
    $region14: #{critic_hierarchical_pallas.2} parent=1 // pred_check
      _
    $region15: #{critic_hierarchical_pallas.2} parent=1 // pred_check_branch
      %28 = sbr.rel (0) target = $region17
    $region16: #{critic_hierarchical_pallas.2} parent=1 // pred_region
      _
    $region17: #{critic_hierarchical_pallas.2} parent=1 // pred_fallthru
      _
    // Predicated region
    $region18: #{critic_hierarchical_pallas.2} parent=1 // pred_check
      _
    $region19: #{critic_hierarchical_pallas.2} parent=1 // pred_check_branch
      %30 = sbr.rel (0) target = $region21
    $region20: #{critic_hierarchical_pallas.2} parent=1 // pred_region
      _
    $region21: #{critic_hierarchical_pallas.2} parent=1 // pred_fallthru
      _
    // Predicated region
    $region22: #{critic_hierarchical_pallas.2} parent=1 // pred_check
      _
    $region23: #{critic_hierarchical_pallas.2} parent=1 // pred_check_branch
      %32 = sbr.rel (0) target = $region25
    $region24: #{critic_hierarchical_pallas.2} parent=1 // pred_region
      _
    $region25: #{critic_hierarchical_pallas.2} parent=1 // pred_fallthru
      _
    // Predicated region
    $region26: #{critic_hierarchical_pallas.2} parent=1 // pred_check
      _
    $region27: #{critic_hierarchical_pallas.2} parent=1 // pred_check_branch
      %34 = sbr.rel (0) target = $region29
    $region28: #{critic_hierarchical_pallas.2} parent=1 // pred_region
      _
    $region29: #{critic_hierarchical_pallas.2} parent=1 // pred_fallthru
      _
    // Predicated region
    $region30: #{critic_hierarchical_pallas.2} parent=1 // pred_check
      _
    $region31: #{critic_hierarchical_pallas.2} parent=1 // pred_check_branch
      %36 = sbr.rel (0) target = $region33
    $region32: #{critic_hierarchical_pallas.2} parent=1 // pred_region
      _
    $region33: #{critic_hierarchical_pallas.2} parent=1 // pred_fallthru
      _
    %s38 = sor.u32 3, 1
    %s39 = sand.u32 %s38, 1
    %v40 = vld [vmem:[%s8] sm:%s39]
    %v41 = vunpack.c.l.bf16 %v40
    %v42 = vunpack.c.h.bf16 %v40
    %v43 = vlaneseq
    %v44 = vshrl.u32 %v43, 7
    %vm46 = vcmp.lt.s32.totalorder %v44, 2
    %v47 = vsel %vm46, %v41, %v16
    %v48 = vpack.c.bf16 0.0, %v47
    %50 = vst [vmem:[#allocation12] sm:$0xf] %v48
    %v51 = vld [vmem:[%s6] sm:$0x3]
    %v52 = vlaneseq
    %v53 = vshrl.u32 %v52, 7
    %vm55 = vcmp.lt.s32.totalorder %v53, 2
    %v56 = vsel %vm55, %v51, %v20
    %v57 = vlaneseq
    %v58 = vand.u32 %v57, 127
    %vm60 = vcmp.lt.s32.totalorder %v58, 9
    %v61 = vsel %vm60, %v56, %v20
    %63 = vst [vmem:[#allocation13] sm:$0xff] %v61
    %v65 = vld [vmem:[#allocation12] sm:$0xf]
    %v66 = vld [vmem:[%s0] sm:$0xff]
    %v67 = vld [vmem:[%s0 + $0x8] sm:$0xf]
    %v68 = vld [vmem:[%s0 + $0xc] sm:$0xff]
    %v69 = vld [vmem:[%s0 + $0x14] sm:$0xf]
    %v70 = vld [vmem:[%s0 + $0x18] sm:$0xff]
    %v71 = vld [vmem:[%s0 + $0x20] sm:$0xf]
    %v72 = vld [vmem:[%s0 + $0x24] sm:$0xff]
    %v73 = vld [vmem:[%s0 + $0x2c] sm:$0xf]
    %v74 = vld [vmem:[%s0 + $0x30] sm:$0xff]
    %v75 = vld [vmem:[%s0 + $0x38] sm:$0xf]
    %v76 = vld [vmem:[%s0 + $0x3c] sm:$0xff]
    %v77 = vld [vmem:[%s0 + $0x44] sm:$0xf]
    %v78 = vld [vmem:[%s0 + $0x48] sm:$0xff]
    %v79 = vld [vmem:[%s0 + $0x50] sm:$0xf]
    %v80 = vld [vmem:[%s0 + $0x54] sm:$0xff]
    %v81 = vld [vmem:[%s0 + $0x5c] sm:$0xf]
    %v82 = vld [vmem:[%s0 + $0x60] sm:$0xff]
    %v83 = vld [vmem:[%s0 + $0x68] sm:$0xf]
    %v84 = vld [vmem:[%s0 + $0x6c] sm:$0xff]
    %v85 = vld [vmem:[%s0 + $0x74] sm:$0xf]
    %v86 = vld [vmem:[%s0 + $0x78] sm:$0xff]
    %v87 = vld [vmem:[%s0 + $0x80] sm:$0xf]
    %v88 = vld [vmem:[%s0 + $0x84] sm:$0xff]
    %v89 = vld [vmem:[%s0 + $0x8c] sm:$0xf]
    %v90 = vld [vmem:[%s0 + $0x90] sm:$0xff]
    %v91 = vld [vmem:[%s0 + $0x98] sm:$0xf]
    %v92 = vld [vmem:[%s0 + $0x9c] sm:$0xff]
    %v93 = vld [vmem:[%s0 + $0xa4] sm:$0xf]
    %v94 = vld [vmem:[%s0 + $0xa8] sm:$0xff]
    %v95 = vld [vmem:[%s0 + $0xb0] sm:$0xf]
    %v96 = vld [vmem:[%s0 + $0xb4] sm:$0xff]
    %v97 = vld [vmem:[%s0 + $0xbc] sm:$0xf]
    %v98 = vld [vmem:[%s1] sm:$0x7]
    %v100 = vlaneseq
    %v101 = vshrl.u32 %v100, 7
    %v102 = vsub.s32 0, %v101
    %v103 = vrot.slane %v98, %v102
    %v104 = vlaneseq
    %v105 = vshrl.u32 %v104, 7
    %v106 = vsub.s32 1, %v105
    %v107 = vrot.slane %v98, %v106
    %v108 = vlaneseq
    %v109 = vshrl.u32 %v108, 7
    %v110 = vsub.s32 2, %v109
    %v111 = vrot.slane %v98, %v110
    %v147 = vunpack.c.l.b16 %v66
    %v148 = vunpack.c.h.b16 %v66
    %v149 = vunpack.c.l.b16 %v67
    %v150 = vunpack.c.l.b16 %v68
    %v151 = vunpack.c.h.b16 %v68
    %v152 = vunpack.c.l.b16 %v69
    %v153 = vunpack.c.l.b16 %v70
    %v154 = vunpack.c.h.b16 %v70
    %v155 = vunpack.c.l.b16 %v71
    %v156 = vunpack.c.l.b16 %v72
    %v157 = vunpack.c.h.b16 %v72
    %v158 = vunpack.c.l.b16 %v73
    %v159 = vunpack.c.l.b16 %v74
    %v160 = vunpack.c.h.b16 %v74
    %v161 = vunpack.c.l.b16 %v75
    %v162 = vunpack.c.l.b16 %v76
    %v163 = vunpack.c.h.b16 %v76
    %v164 = vunpack.c.l.b16 %v77
    %v165 = vunpack.c.l.b16 %v78
    %v166 = vunpack.c.h.b16 %v78
    %v167 = vunpack.c.l.b16 %v79
    %v168 = vunpack.c.l.b16 %v80
    %v169 = vunpack.c.h.b16 %v80
    %v170 = vunpack.c.l.b16 %v81
    %v171 = vunpack.c.l.b16 %v82
    %v172 = vunpack.c.h.b16 %v82
    %v173 = vunpack.c.l.b16 %v83
    %v174 = vunpack.c.l.b16 %v84
    %v175 = vunpack.c.h.b16 %v84
    %v176 = vunpack.c.l.b16 %v85
    %v177 = vunpack.c.l.b16 %v86
    %v178 = vunpack.c.h.b16 %v86
    %v179 = vunpack.c.l.b16 %v87
    %v180 = vunpack.c.l.b16 %v88
    %v181 = vunpack.c.h.b16 %v88
    %v182 = vunpack.c.l.b16 %v89
    %v183 = vunpack.c.l.b16 %v90
    %v184 = vunpack.c.h.b16 %v90
    %v185 = vunpack.c.l.b16 %v91
    %v186 = vunpack.c.l.b16 %v92
    %v187 = vunpack.c.h.b16 %v92
    %v188 = vunpack.c.l.b16 %v93
    %v189 = vunpack.c.l.b16 %v94
    %v190 = vunpack.c.h.b16 %v94
    %v191 = vunpack.c.l.b16 %v95
    %v192 = vunpack.c.l.b16 %v96
    %v193 = vunpack.c.h.b16 %v96
    %v194 = vunpack.c.l.b16 %v97
    %v195 = vpack.c.b16 %v150, %v147
    %v196 = vpack.c.b16 %v151, %v148
    %v197 = vpack.c.b16 %v152, %v149
    %v198 = vpack.c.b16 %v156, %v153
    %v199 = vpack.c.b16 %v157, %v154
    %v200 = vpack.c.b16 %v158, %v155
    %v201 = vpack.c.b16 %v162, %v159
    %v202 = vpack.c.b16 %v163, %v160
    %v203 = vpack.c.b16 %v164, %v161
    %v204 = vpack.c.b16 %v168, %v165
    %v205 = vpack.c.b16 %v169, %v166
    %v206 = vpack.c.b16 %v170, %v167
    %v207 = vpack.c.b16 %v174, %v171
    %v208 = vpack.c.b16 %v175, %v172
    %v209 = vpack.c.b16 %v176, %v173
    %v210 = vpack.c.b16 %v180, %v177
    %v211 = vpack.c.b16 %v181, %v178
    %v212 = vpack.c.b16 %v182, %v179
    %v213 = vpack.c.b16 %v186, %v183
    %v214 = vpack.c.b16 %v187, %v184
    %v215 = vpack.c.b16 %v188, %v185
    %v216 = vpack.c.b16 %v192, %v189
    %v217 = vpack.c.b16 %v193, %v190
    %v218 = vpack.c.b16 %v194, %v191
    %243 = vmatprep.subr.bf16.mxu0 %v196
    %244 = vmatpush1.bf16.msra.mxu0 %v195
    %245 = vmatprep.subr.bf16.mxu0 %v199
    %246 = vmatpush1.bf16.msra.mxu0 %v198
    %247 = vmatprep.subr.bf16.mxu0 %v202
    %248 = vmatpush1.bf16.msra.mxu0 %v201
    %249 = vmatprep.subr.bf16.mxu0 %v205
    %250 = vmatpush1.bf16.msra.mxu0 %v204
    %251 = vmatprep.subr.bf16.mxu0 %v208
    %252 = vmatpush1.bf16.msra.mxu0 %v207
    %253 = vmatprep.subr.bf16.mxu0 %v211
    %254 = vmatpush1.bf16.msra.mxu0 %v210
    %255 = vmatprep.subr.bf16.mxu0 %v214
    %256 = vmatpush1.bf16.msra.mxu0 %v213
    %257 = vmatprep.subr.bf16.mxu0 %v217
    %258 = vmatpush1.bf16.msra.mxu0 %v216
    %259 = vmatprep.subr.bf16.mxu0 0
    %260 = vmatpush1.bf16.msra.mxu0 0
    %261 = vmatprep.subr.bf16.mxu0 0
    %262 = vmatpush1.bf16.msra.mxu0 0
    %263 = vmatprep.subr.bf16.mxu0 0
    %264 = vmatpush1.bf16.msra.mxu0 0
    %265 = vmatprep.subr.bf16.mxu0 0
    %266 = vmatpush1.bf16.msra.mxu0 0
    %267 = vmatprep.subr.bf16.mxu0 0
    %268 = vmatpush1.bf16.msra.mxu0 0
    %269 = vmatprep.subr.bf16.mxu0 0
    %270 = vmatpush1.bf16.msra.mxu0 0
    %271 = vmatprep.subr.bf16.mxu0 0
    %272 = vmatpush1.bf16.msra.mxu0 0
    %273 = vmatprep.subr.bf16.mxu0 0
    %274 = vmatpush1.bf16.msra.mxu0 0
    %275 = vmatprep.mubr.bf16.mxu0 0
    %276 = vmatmul.mubr.bf16.gmra.mrb[0].mxu0 %v65
    %v277 = vpop.f32.mrb[0].mxu0
    %v278 = vadd.f32 %v103, %v277
    %v279 = vpop.f32.mrb[0].mxu0
    %v280 = vadd.f32 %v107, %v279
    %v281 = vpop.f32.mrb[0].mxu0
    %v282 = vpop.f32.mrb[0].mxu0
    %283 = vdwg.mxu0
    %284 = vmatprep.subr.bf16.mxu0 0
    %285 = vmatpush1.bf16.msra.mxu0 %v197
    %286 = vmatprep.subr.bf16.mxu0 0
    %287 = vmatpush1.bf16.msra.mxu0 %v200
    %288 = vmatprep.subr.bf16.mxu0 0
    %289 = vmatpush1.bf16.msra.mxu0 %v203
    %290 = vmatprep.subr.bf16.mxu0 0
    %291 = vmatpush1.bf16.msra.mxu0 %v206
    %292 = vmatprep.subr.bf16.mxu0 0
    %293 = vmatpush1.bf16.msra.mxu0 %v209
    %294 = vmatprep.subr.bf16.mxu0 0
    %295 = vmatpush1.bf16.msra.mxu0 %v212
    %296 = vmatprep.subr.bf16.mxu0 0
    %297 = vmatpush1.bf16.msra.mxu0 %v215
    %298 = vmatprep.subr.bf16.mxu0 0
    %299 = vmatpush1.bf16.msra.mxu0 %v218
    %300 = vmatprep.subr.bf16.mxu0 0
    %301 = vmatpush1.bf16.msra.mxu0 0
    %302 = vmatprep.subr.bf16.mxu0 0
    %303 = vmatpush1.bf16.msra.mxu0 0
    %304 = vmatprep.subr.bf16.mxu0 0
    %305 = vmatpush1.bf16.msra.mxu0 0
    %306 = vmatprep.subr.bf16.mxu0 0
    %307 = vmatpush1.bf16.msra.mxu0 0
    %308 = vmatprep.subr.bf16.mxu0 0
    %309 = vmatpush1.bf16.msra.mxu0 0
    %310 = vmatprep.subr.bf16.mxu0 0
    %311 = vmatpush1.bf16.msra.mxu0 0
    %312 = vmatprep.subr.bf16.mxu0 0
    %313 = vmatpush1.bf16.msra.mxu0 0
    %314 = vmatprep.subr.bf16.mxu0 0
    %315 = vmatpush1.bf16.msra.mxu0 0
    %316 = vmatprep.mubr.bf16.mxu0 0
    %317 = vmatmul.mubr.bf16.gmra.mrb[0].mxu0 %v65
    %v318 = vpop.f32.mrb[0].mxu0
    %v319 = vadd.f32 %v111, %v318
    %v320 = vpop.f32.mrb[0].mxu0
    %v321 = vpop.f32.mrb[0].mxu0
    %v322 = vpop.f32.mrb[0].mxu0
    %323 = vdwg.mxu0
    %v324 = vmax.f32 %v278, 0.0
    %v325 = vmax.f32 %v280, 0.0
    %v326 = vmax.f32 %v319, 0.0
    %v327 = vpack.c.bf16 %v324, %v324
    %v328 = vpack.c.bf16 %v325, %v325
    %v329 = vpack.c.bf16 %v326, %v326
    %v330 = vld [vmem:[%s2] sm:$0xf]
    %v331 = vld [vmem:[%s2 + $0x4] sm:$0xf]
    %v332 = vld [vmem:[%s2 + $0x8] sm:$0xf]
    %v333 = vld [vmem:[%s2 + $0xc] sm:$0xf]
    %v334 = vld [vmem:[%s2 + $0x10] sm:$0xf]
    %v335 = vld [vmem:[%s2 + $0x14] sm:$0xf]
    %v336 = vld [vmem:[%s2 + $0x18] sm:$0xf]
    %v337 = vld [vmem:[%s2 + $0x1c] sm:$0xf]
    %v338 = vld [vmem:[%s2 + $0x20] sm:$0xf]
    %v339 = vld [vmem:[%s2 + $0x24] sm:$0xf]
    %v340 = vld [vmem:[%s2 + $0x28] sm:$0xf]
    %v341 = vld [vmem:[%s2 + $0x2c] sm:$0xf]
    %v342 = vld [vmem:[%s2 + $0x30] sm:$0xf]
    %v343 = vld [vmem:[%s2 + $0x34] sm:$0xf]
    %v344 = vld [vmem:[%s2 + $0x38] sm:$0xf]
    %v345 = vld [vmem:[%s2 + $0x3c] sm:$0xf]
    %v346 = vld [vmem:[%s2 + $0x40] sm:$0xf]
    %v347 = vld [vmem:[%s2 + $0x44] sm:$0xf]
    %v348 = vld [vmem:[%s2 + $0x48] sm:$0xf]
    %v349 = vld [vmem:[%s2 + $0x4c] sm:$0xf]
    %v350 = vld [vmem:[%s2 + $0x50] sm:$0xf]
    %v351 = vld [vmem:[%s2 + $0x54] sm:$0xf]
    %v352 = vld [vmem:[%s2 + $0x58] sm:$0xf]
    %v353 = vld [vmem:[%s2 + $0x5c] sm:$0xf]
    %v354 = vld [vmem:[%s2 + $0x60] sm:$0xf]
    %v355 = vld [vmem:[%s2 + $0x64] sm:$0xf]
    %v356 = vld [vmem:[%s2 + $0x68] sm:$0xf]
    %v357 = vld [vmem:[%s2 + $0x6c] sm:$0xf]
    %v358 = vld [vmem:[%s2 + $0x70] sm:$0xf]
    %v359 = vld [vmem:[%s2 + $0x74] sm:$0xf]
    %v360 = vld [vmem:[%s2 + $0x78] sm:$0xf]
    %v361 = vld [vmem:[%s2 + $0x7c] sm:$0xf]
    %v362 = vld [vmem:[%s2 + $0x80] sm:$0xf]
    %v363 = vld [vmem:[%s2 + $0x84] sm:$0xf]
    %v364 = vld [vmem:[%s2 + $0x88] sm:$0xf]
    %v365 = vld [vmem:[%s2 + $0x8c] sm:$0xf]
    %v366 = vld [vmem:[%s2 + $0x90] sm:$0xf]
    %v367 = vld [vmem:[%s2 + $0x94] sm:$0xf]
    %v368 = vld [vmem:[%s2 + $0x98] sm:$0xf]
    %v369 = vld [vmem:[%s2 + $0x9c] sm:$0xf]
    %v370 = vld [vmem:[%s3] sm:$0x1]
    %v372 = vlaneseq
    %v373 = vshrl.u32 %v372, 7
    %v374 = vsub.s32 0, %v373
    %v375 = vrot.slane %v370, %v374
    %v417 = vunpack.c.l.b16 %v330
    %v418 = vunpack.c.l.b16 %v331
    %v419 = vunpack.c.l.b16 %v332
    %v420 = vunpack.c.l.b16 %v333
    %v421 = vunpack.c.l.b16 %v334
    %v422 = vunpack.c.l.b16 %v335
    %v423 = vunpack.c.l.b16 %v336
    %v424 = vunpack.c.l.b16 %v337
    %v425 = vunpack.c.l.b16 %v338
    %v426 = vunpack.c.l.b16 %v339
    %v427 = vunpack.c.l.b16 %v340
    %v428 = vunpack.c.l.b16 %v341
    %v429 = vunpack.c.l.b16 %v342
    %v430 = vunpack.c.l.b16 %v343
    %v431 = vunpack.c.l.b16 %v344
    %v432 = vunpack.c.l.b16 %v345
    %v433 = vunpack.c.l.b16 %v346
    %v434 = vunpack.c.l.b16 %v347
    %v435 = vunpack.c.l.b16 %v348
    %v436 = vunpack.c.l.b16 %v349
    %v437 = vunpack.c.l.b16 %v350
    %v438 = vunpack.c.l.b16 %v351
    %v439 = vunpack.c.l.b16 %v352
    %v440 = vunpack.c.l.b16 %v353
    %v441 = vunpack.c.l.b16 %v354
    %v442 = vunpack.c.l.b16 %v355
    %v443 = vunpack.c.l.b16 %v356
    %v444 = vunpack.c.l.b16 %v357
    %v445 = vunpack.c.l.b16 %v358
    %v446 = vunpack.c.l.b16 %v359
    %v447 = vunpack.c.l.b16 %v360
    %v448 = vunpack.c.l.b16 %v361
    %v449 = vunpack.c.l.b16 %v362
    %v450 = vunpack.c.l.b16 %v363
    %v451 = vunpack.c.l.b16 %v364
    %v452 = vunpack.c.l.b16 %v365
    %v453 = vunpack.c.l.b16 %v366
    %v454 = vunpack.c.l.b16 %v367
    %v455 = vunpack.c.l.b16 %v368
    %v456 = vunpack.c.l.b16 %v369
    %v457 = vpack.c.b16 %v418, %v417
    %v458 = vpack.c.b16 %v420, %v419
    %v459 = vpack.c.b16 %v422, %v421
    %v460 = vpack.c.b16 %v424, %v423
    %v461 = vpack.c.b16 %v426, %v425
    %v462 = vpack.c.b16 %v428, %v427
    %v463 = vpack.c.b16 %v430, %v429
    %v464 = vpack.c.b16 %v432, %v431
    %v465 = vpack.c.b16 %v434, %v433
    %v466 = vpack.c.b16 %v436, %v435
    %v467 = vpack.c.b16 %v438, %v437
    %v468 = vpack.c.b16 %v440, %v439
    %v469 = vpack.c.b16 %v442, %v441
    %v470 = vpack.c.b16 %v444, %v443
    %v471 = vpack.c.b16 %v446, %v445
    %v472 = vpack.c.b16 %v448, %v447
    %v473 = vpack.c.b16 %v450, %v449
    %v474 = vpack.c.b16 %v452, %v451
    %v475 = vpack.c.b16 %v454, %v453
    %v476 = vpack.c.b16 %v456, %v455
    %vm497 = vcmask 523264
    %v499 = vsel %vm497, %v329, 0
    %501 = vmatprep.subr.bf16.mxu0 0
    %502 = vmatpush1.bf16.msra.mxu0 %v457
    %503 = vmatprep.subr.bf16.mxu0 0
    %504 = vmatpush1.bf16.msra.mxu0 %v458
    %505 = vmatprep.subr.bf16.mxu0 0
    %506 = vmatpush1.bf16.msra.mxu0 %v459
    %507 = vmatprep.subr.bf16.mxu0 0
    %508 = vmatpush1.bf16.msra.mxu0 %v460
    %509 = vmatprep.subr.bf16.mxu0 0
    %510 = vmatpush1.bf16.msra.mxu0 %v461
    %511 = vmatprep.subr.bf16.mxu0 0
    %512 = vmatpush1.bf16.msra.mxu0 %v462
    %513 = vmatprep.subr.bf16.mxu0 0
    %514 = vmatpush1.bf16.msra.mxu0 %v463
    %515 = vmatprep.subr.bf16.mxu0 0
    %516 = vmatpush1.bf16.msra.mxu0 %v464
    %517 = vmatprep.subr.bf16.mxu0 0
    %518 = vmatpush1.bf16.msra.mxu0 %v465
    %519 = vmatprep.subr.bf16.mxu0 0
    %520 = vmatpush1.bf16.msra.mxu0 %v466
    %521 = vmatprep.subr.bf16.mxu0 0
    %522 = vmatpush1.bf16.msra.mxu0 %v467
    %523 = vmatprep.subr.bf16.mxu0 0
    %524 = vmatpush1.bf16.msra.mxu0 %v468
    %525 = vmatprep.subr.bf16.mxu0 0
    %526 = vmatpush1.bf16.msra.mxu0 %v469
    %527 = vmatprep.subr.bf16.mxu0 0
    %528 = vmatpush1.bf16.msra.mxu0 %v470
    %529 = vmatprep.subr.bf16.mxu0 0
    %530 = vmatpush1.bf16.msra.mxu0 %v471
    %531 = vmatprep.subr.bf16.mxu0 0
    %532 = vmatpush1.bf16.msra.mxu0 %v472
    %533 = vmatprep.mubr.bf16.mxu0 %v328
    %534 = vmatmul.mubr.bf16.gmra.mrb[0].mxu0 %v327
    %v535 = vpop.f32.mrb[0].mxu0
    %v536 = vadd.f32 %v375, %v535
    %v537 = vpop.f32.mrb[0].mxu0
    %v538 = vpop.f32.mrb[0].mxu0
    %v539 = vpop.f32.mrb[0].mxu0
    %540 = vdwg.mxu0
    %541 = vmatprep.subr.bf16.mxu0 0
    %542 = vmatpush1.bf16.msra.mxu0 %v473
    %543 = vmatprep.subr.bf16.mxu0 0
    %544 = vmatpush1.bf16.msra.mxu0 %v474
    %545 = vmatprep.subr.bf16.mxu0 0
    %546 = vmatpush1.bf16.msra.mxu0 %v475
    %547 = vmatprep.subr.bf16.mxu0 0
    %548 = vmatpush1.bf16.msra.mxu0 %v476
    %549 = vmatprep.subr.bf16.mxu0 0
    %550 = vmatpush1.bf16.msra.mxu0 0
    %551 = vmatprep.subr.bf16.mxu0 0
    %552 = vmatpush1.bf16.msra.mxu0 0
    %553 = vmatprep.subr.bf16.mxu0 0
    %554 = vmatpush1.bf16.msra.mxu0 0
    %555 = vmatprep.subr.bf16.mxu0 0
    %556 = vmatpush1.bf16.msra.mxu0 0
    %557 = vmatprep.subr.bf16.mxu0 0
    %558 = vmatpush1.bf16.msra.mxu0 0
    %559 = vmatprep.subr.bf16.mxu0 0
    %560 = vmatpush1.bf16.msra.mxu0 0
    %561 = vmatprep.subr.bf16.mxu0 0
    %562 = vmatpush1.bf16.msra.mxu0 0
    %563 = vmatprep.subr.bf16.mxu0 0
    %564 = vmatpush1.bf16.msra.mxu0 0
    %565 = vmatprep.subr.bf16.mxu0 0
    %566 = vmatpush1.bf16.msra.mxu0 0
    %567 = vmatprep.subr.bf16.mxu0 0
    %568 = vmatpush1.bf16.msra.mxu0 0
    %569 = vmatprep.subr.bf16.mxu0 0
    %570 = vmatpush1.bf16.msra.mxu0 0
    %571 = vmatprep.subr.bf16.mxu0 0
    %572 = vmatpush1.bf16.msra.mxu0 0
    %573 = vmatprep.mubr.bf16.mxu0 0
    %574 = vmatmul.mubr.bf16.gmra.mrb[0].mxu0 %v499
    %v575 = vpop.f32.mrb[0].mxu0
    %v576 = vadd.f32 %v536, %v575
    %v577 = vpop.f32.mrb[0].mxu0
    %v578 = vpop.f32.mrb[0].mxu0
    %v579 = vpop.f32.mrb[0].mxu0
    %580 = vdwg.mxu0
    %v581 = vmax.f32 %v576, 0.0
    %v582 = vld [vmem:[%s4] sm:$0x1]
    %v584 = vlaneseq
    %v585 = vshrl.u32 %v584, 7
    %v586 = vsub.s32 0, %v585
    %v587 = vrot.slane %v582, %v586
    %v589 = vmul.f32 %v581, %v587
    %590 = vadd.xlane.f32.xlu0 %v589
    %v591 = vpop.xlane.xlu0 %590
    %v592 = vld [vmem:[#allocation13] sm:$0xff]
    %v593 = vld [vmem:[%s5] sm:$0x1]
    %v595 = vlaneseq
    %v596 = vshrl.u32 %v595, 7
    %v597 = vsub.s32 0, %v596
    %v598 = vrot.slane %v593, %v597
    %v600 = vmul.f32 %v592, %v598
    %vm601 = vcmask 72704
    %v602 = vsel %vm601, %v600, 0.0
    %603 = vadd.xlane.f32.xlu0 %v602
    %v604 = vpop.xlane.xlu0 %603
    %v605 = vadd.f32 %v591, %v604
    %606 = vst [vmem:[%s10] sm:$0xff] %v605
    // Predicated region
    $region34: #{critic_hierarchical_pallas.2} parent=1 // pred_check
      _
    $region35: #{critic_hierarchical_pallas.2} parent=1 // pred_check_branch
      %608 = sbr.rel (0) target = $region37
    $region36: #{critic_hierarchical_pallas.2} parent=1 // pred_region
      _
    $region37: #{critic_hierarchical_pallas.2} parent=1 // pred_fallthru
      _
    // Predicated region
    $region38: #{critic_hierarchical_pallas.2} parent=1 // pred_check
      _
    $region39: #{critic_hierarchical_pallas.2} parent=1 // pred_check_branch
      %610 = sbr.rel (0) target = $region41
    $region40: #{critic_hierarchical_pallas.2} parent=1 // pred_region
      _
    $region41: #{critic_hierarchical_pallas.2} parent=1 // pred_fallthru
      _

</llo_original>
